<compile_context>
chip_gen: v7x
topology: tpu7x:2x2x1
jax: 0.10.0
libtpu: 0.0.40
codegen_flags: <defaults>
</compile_context>

<pallas_src>
import functools
import math

import jax
import jax.numpy as jnp
from jax.experimental import pallas as pl
from jax.experimental.pallas import tpu as pltpu

SYMBOLS = ['<sos>', '<eos>', '<pad>', 'a', 'b', 'c', 'd', 'e', 'f', 'g', 'h', 'i']
OUTPUT_DIM = len(SYMBOLS)

LANE = 128
SUBLANE = 8


def _round_up(x, m):
    return ((x + m - 1) // m) * m


# ----------------------------------------------------------------------------
# Kernel
# ----------------------------------------------------------------------------
def decoder_kernel(n_layers, hid_dim, vpad, *refs):
    """Single decode step; one fused (B,K)@(K,8H) matmul per layer + fc matmul."""
    H2 = 2 * hid_dim

    idx = 0
    tok_ref = refs[idx]; idx += 1                 # (Bp, 1) int32
    h_in_ref = refs[idx]; idx += 1                # (Bp, 2L*H)   [l0_f|l0_b|l1_f|l1_b|...]
    c_in_ref = refs[idx]; idx += 1                # (Bp, 2L*H)
    w_refs, b_refs = [], []
    for _ in range(n_layers):
        w_refs.append(refs[idx]); b_refs.append(refs[idx + 1]); idx += 2
    fc_w_ref = refs[idx]; fc_b_ref = refs[idx + 1]; idx += 2
    pred_ref = refs[idx]                           # (Bp, OUT_PAD)
    h_out_ref = refs[idx + 1]                      # (Bp, 2L*H)
    c_out_ref = refs[idx + 2]                      # (Bp, 2L*H)

    # one-hot token (the embedding lookup is folded into the layer-0 weights)
    tok = tok_ref[...]                             # (Bp, 1)
    Bp = tok.shape[0]
    iota = jax.lax.broadcasted_iota(jnp.int32, (Bp, vpad), 1)
    x = (iota == tok).astype(jnp.float32)          # (Bp, vpad)
    # TODO(synk): nn.Dropout is identity at inference time; intentionally a no-op.

    h_parts, c_parts = [], []
    for l in range(n_layers):
        h_prev = h_in_ref[:, l * H2:(l + 1) * H2]  # (Bp, 2H)  [fwd|bwd]
        c_prev = c_in_ref[:, l * H2:(l + 1) * H2]
        lhs = jnp.concatenate([x, h_prev], axis=-1)             # (Bp, K_l)
        gates = (jnp.dot(lhs, w_refs[l][...],
                         preferred_element_type=jnp.float32)
                 + b_refs[l][...])                              # (Bp, 8H)
        # gate blocks are 2H wide: [i | f | o | g], each [fwd|bwd]
        sig = jax.nn.sigmoid(gates[:, :3 * H2])                 # i,f,o in one pass
        g = jnp.tanh(gates[:, 3 * H2:])                         # (Bp, 2H)
        i = sig[:, 0 * H2:1 * H2]
        f = sig[:, 1 * H2:2 * H2]
        o = sig[:, 2 * H2:3 * H2]
        c_new = f * c_prev + i * g                              # (Bp, 2H)
        h_new = o * jnp.tanh(c_new)                             # (Bp, 2H)
        h_parts.append(h_new); c_parts.append(c_new)
        x = h_new                                               # already [fwd|bwd]

    # single lane-dense store per state (Bp, 2L*H)
    h_out_ref[...] = jnp.concatenate(h_parts, axis=-1)
    c_out_ref[...] = jnp.concatenate(c_parts, axis=-1)

    # fc_out on the top-layer output (Bp, 2H) -> lane-dense (Bp, OUT_PAD)
    pred_ref[...] = (jnp.dot(x, fc_w_ref[...], preferred_element_type=jnp.float32)
                     + fc_b_ref[...])


# ----------------------------------------------------------------------------
# Wrapper-side weight packing
# ----------------------------------------------------------------------------
def _pack_layer_weights(lstm_params, layer, hid_dim, embedding=None, vpad=None):
    """Fuse both directions of one LSTM layer into a single (K, 8H) weight.

    Column order: [i_f|i_b | f_f|f_b | o_f|o_b | g_f|g_b]  (sigmoid gates first).
    Row order   : [x rows (embedding-folded & padded for layer 0) | h_fwd | h_bwd].
    Bias        : b_ih + b_hh pre-added, same column order.
    """
    H = hid_dim
    w_ih_f, w_hh_f, b_ih_f, b_hh_f = lstm_params[2 * layer + 0]
    w_ih_b, w_hh_b, b_ih_b, b_hh_b = lstm_params[2 * layer + 1]
    wx_f, wx_b = w_ih_f.T, w_ih_b.T                # (in_dim, 4H)
    wh_f, wh_b = w_hh_f.T, w_hh_b.T                # (H, 4H)
    zH = jnp.zeros((H, H), jnp.float32)
    bf = b_ih_f + b_hh_f
    bb = b_ih_b + b_hh_b

    # PyTorch gate row order is [i, f, g, o]; we emit columns as [i, f, o, g].
    wx_cols, wh_cols, b_parts = [], [], []
    for g in (0, 1, 3, 2):
        sl = slice(g * H, (g + 1) * H)
        wx_cols += [wx_f[:, sl], wx_b[:, sl]]
        wh_cols += [jnp.concatenate([wh_f[:, sl], zH], axis=0),   # fwd cols
                    jnp.concatenate([zH, wh_b[:, sl]], axis=0)]   # bwd cols
        b_parts += [bf[sl], bb[sl]]

    W_x = jnp.concatenate(wx_cols, axis=1)          # (in_dim, 8H)
    W_h = jnp.concatenate(wh_cols, axis=1)          # (2H, 8H)  block-diag per dir
    bias = jnp.concatenate(b_parts).reshape(1, 8 * H)

    if embedding is not None:
        # fold embedding lookup into the layer-0 input weights, pad rows to vpad
        fused = embedding @ W_x                     # (V, 8H)
        W_x = jnp.zeros((vpad, 8 * H), jnp.float32).at[:fused.shape[0]].set(fused)

    W = jnp.concatenate([W_x, W_h], axis=0)         # (K, 8H)
    return W, bias


def decoder_forward(params, tokens, hidden, cell, *, n_layers, hid_dim):
    B = tokens.shape[0]
    H = hid_dim
    H2 = 2 * H
    V, _E = params['embedding'].shape
    out_dim = params['fc_w'].shape[0]

    Bp = _round_up(max(B, SUBLANE), SUBLANE)        # pad batch to a sublane group
    vpad = max(_round_up(V, H2), H2)                # one-hot width so K0 = vpad + 2H
    OUT_PAD = _round_up(out_dim, LANE)              # lane-dense prediction

    # tokens / states (pad batch rows with zeros; strip after the call)
    tok = jnp.zeros((Bp, 1), jnp.int32).at[:B, 0].set(tokens.astype(jnp.int32))
    # (2L, B, H) -> (B, 2L*H), row layout [l0_fwd | l0_bwd | l1_fwd | l1_bwd | ...]
    h_pack = jnp.zeros((Bp, 2 * n_layers * H), jnp.float32).at[:B].set(
        jnp.transpose(hidden, (1, 0, 2)).reshape(B, 2 * n_layers * H))
    c_pack = jnp.zeros((Bp, 2 * n_layers * H), jnp.float32).at[:B].set(
        jnp.transpose(cell, (1, 0, 2)).reshape(B, 2 * n_layers * H))

    args = [tok, h_pack, c_pack]
    for l in range(n_layers):
        emb = params['embedding'] if l == 0 else None
        W, bias = _pack_layer_weights(params['lstm'], l, H, embedding=emb, vpad=vpad)
        args += [W, bias]

    fc_w = jnp.zeros((H2, OUT_PAD), jnp.float32).at[:, :out_dim].set(params['fc_w'].T)
    fc_b = jnp.zeros((1, OUT_PAD), jnp.float32).at[0, :out_dim].set(params['fc_b'])
    args += [fc_w, fc_b]

    kernel = functools.partial(decoder_kernel, n_layers, hid_dim, vpad)
    vmem = pl.BlockSpec(memory_space=pltpu.MemorySpace.VMEM)

    pred_p, h_p, c_p = pl.pallas_call(
        kernel,
        out_shape=(jax.ShapeDtypeStruct((Bp, OUT_PAD), jnp.float32),
                   jax.ShapeDtypeStruct((Bp, 2 * n_layers * H), jnp.float32),
                   jax.ShapeDtypeStruct((Bp, 2 * n_layers * H), jnp.float32)),
        in_specs=[vmem] * len(args),
        out_specs=(vmem, vmem, vmem),
    )(*args)

    pred = pred_p[:B, :out_dim]
    h_new = jnp.transpose(h_p[:B].reshape(B, 2 * n_layers, H), (1, 0, 2))
    c_new = jnp.transpose(c_p[:B].reshape(B, 2 * n_layers, H), (1, 0, 2))
    return pred, h_new, c_new


# ----------------------------------------------------------------------------
# Params + pure-JAX reference of the PyTorch forward (eval mode)
# ----------------------------------------------------------------------------
def make_decoder_params(key, output_dim, emb_dim, hid_dim, n_layers):
    keys = iter(jax.random.split(key, 64))
    k = 1.0 / math.sqrt(hid_dim)
    params = {
        'embedding': jax.random.normal(next(keys), (output_dim, emb_dim), jnp.float32)
    }
    lstm = []
    for l in range(n_layers):
        in_dim = emb_dim if l == 0 else 2 * hid_dim
        for _d in range(2):
            w_ih = jax.random.uniform(next(keys), (4 * hid_dim, in_dim), jnp.float32, -k, k)
            w_hh = jax.random.uniform(next(keys), (4 * hid_dim, hid_dim), jnp.float32, -k, k)
            b_ih = jax.random.uniform(next(keys), (4 * hid_dim,), jnp.float32, -k, k)
            b_hh = jax.random.uniform(next(keys), (4 * hid_dim,), jnp.float32, -k, k)
            lstm.append((w_ih, w_hh, b_ih, b_hh))
    params['lstm'] = lstm
    kfc = 1.0 / math.sqrt(2 * hid_dim)
    params['fc_w'] = jax.random.uniform(next(keys), (OUTPUT_DIM, 2 * hid_dim), jnp.float32, -kfc, kfc)
    params['fc_b'] = jax.random.uniform(next(keys), (OUTPUT_DIM,), jnp.float32, -kfc, kfc)
    return params


def decoder_ref(params, tokens, hidden, cell, *, n_layers, hid_dim):
    x = params['embedding'][tokens]
    h_out, c_out = [], []
    for l in range(n_layers):
        outs = []
        for d in range(2):
            w_ih, w_hh, b_ih, b_hh = params['lstm'][2 * l + d]
            h, c = hidden[2 * l + d], cell[2 * l + d]
            gates = x @ w_ih.T + h @ w_hh.T + b_ih + b_hh
            i, f, g, o = jnp.split(gates, 4, axis=-1)
            i, f, o = jax.nn.sigmoid(i), jax.nn.sigmoid(f), jax.nn.sigmoid(o)
            g = jnp.tanh(g)
            c_new = f * c + i * g
            h_new = o * jnp.tanh(c_new)
            h_out.append(h_new); c_out.append(c_new); outs.append(h_new)
        x = jnp.concatenate(outs, axis=-1)
    pred = x @ params['fc_w'].T + params['fc_b']
    return pred, jnp.stack(h_out), jnp.stack(c_out)


if __name__ == "__main__":
    B, EMB, HID, NL = 4, 16, 32, 2

    key = jax.random.PRNGKey(0)
    kp, kt, kh, kc = jax.random.split(key, 4)
    params = make_decoder_params(kp, OUTPUT_DIM, EMB, HID, NL)

    tokens = jax.random.randint(kt, (B,), 0, OUTPUT_DIM, dtype=jnp.int32)
    hidden = jax.random.normal(kh, (2 * NL, B, HID), jnp.float32)
    cell = jax.random.normal(kc, (2 * NL, B, HID), jnp.float32)

    pred, h_new, c_new = decoder_forward(params, tokens, hidden, cell,
                                         n_layers=NL, hid_dim=HID)
    jax.block_until_ready((pred, h_new, c_new))

    pr, hr, cr = decoder_ref(params, tokens, hidden, cell, n_layers=NL, hid_dim=HID)
    assert pred.shape == (B, OUTPUT_DIM)
    assert h_new.shape == (2 * NL, B, HID) and c_new.shape == (2 * NL, B, HID)
    assert jnp.allclose(pred, pr, atol=1e-4), "prediction mismatch"
    assert jnp.allclose(h_new, hr, atol=1e-4), "hidden mismatch"
    assert jnp.allclose(c_new, cr, atol=1e-4), "cell mismatch"

    print("KERNEL_OK")
</pallas_src>

<mosaic_0001>
module attributes {stable_mosaic.version = 11 : i64} {
  func.func @decoder_kernel(%arg0: memref<8x1xi32, #tpu.memory_space<vmem>>, %arg1: memref<8x128xf32, #tpu.memory_space<vmem>>, %arg2: memref<8x128xf32, #tpu.memory_space<vmem>>, %arg3: memref<128x256xf32, #tpu.memory_space<vmem>>, %arg4: memref<1x256xf32, #tpu.memory_space<vmem>>, %arg5: memref<128x256xf32, #tpu.memory_space<vmem>>, %arg6: memref<1x256xf32, #tpu.memory_space<vmem>>, %arg7: memref<64x128xf32, #tpu.memory_space<vmem>>, %arg8: memref<1x128xf32, #tpu.memory_space<vmem>>, %arg9: memref<8x128xf32, #tpu.memory_space<vmem>>, %arg10: memref<8x128xf32, #tpu.memory_space<vmem>>, %arg11: memref<8x128xf32, #tpu.memory_space<vmem>>) attributes {dimension_semantics = [], scalar_prefetch = 0 : i64, scratch_operands = 0 : i64, tpu.core_type = #tpu.core_type<tc>} {
    %c0 = arith.constant 0 : index
    %c0_0 = arith.constant 0 : index
    %0 = vector.load %arg0[%c0, %c0_0] : memref<8x1xi32, #tpu.memory_space<vmem>>, vector<8x1xi32>
    %1 = tpu.iota {dimensions = array<i32: 1>} : vector<8x64xi32>
    %2 = vector.broadcast %0 : vector<8x1xi32> to vector<8x64xi32>
    %3 = arith.cmpi eq, %1, %2 : vector<8x64xi32>
    %4 = arith.extui %3 : vector<8x64xi1> to vector<8x64xi32>
    %5 = arith.sitofp %4 : vector<8x64xi32> to vector<8x64xf32>
    %c0_1 = arith.constant 0 : index
    %c0_2 = arith.constant 0 : index
    %6 = vector.load %arg1[%c0_1, %c0_2] : memref<8x128xf32, #tpu.memory_space<vmem>>, vector<8x64xf32>
    %c0_3 = arith.constant 0 : index
    %c0_4 = arith.constant 0 : index
    %7 = vector.load %arg2[%c0_3, %c0_4] : memref<8x128xf32, #tpu.memory_space<vmem>>, vector<8x64xf32>
    %8 = tpu.concatenate %5, %6 in 1 : vector<8x64xf32>, vector<8x64xf32> -> vector<8x128xf32>
    %c0_5 = arith.constant 0 : index
    %c0_6 = arith.constant 0 : index
    %9 = vector.load %arg3[%c0_5, %c0_6] : memref<128x256xf32, #tpu.memory_space<vmem>>, vector<128x256xf32>
    %cst = arith.constant dense<0.000000e+00> : vector<8x256xf32>
    %10 = tpu.matmul %8, %9, %cst {dimension_numbers = #tpu.dot_dimension_numbers<[1], [0], [0], [1], [0, 0, 1, 1], [], []>} : vector<8x128xf32>, vector<128x256xf32>, vector<8x256xf32> -> vector<8x256xf32>
    %c0_7 = arith.constant 0 : index
    %c0_8 = arith.constant 0 : index
    %11 = vector.load %arg4[%c0_7, %c0_8] : memref<1x256xf32, #tpu.memory_space<vmem>>, vector<1x256xf32>
    %12 = vector.broadcast %11 : vector<1x256xf32> to vector<8x256xf32>
    %13 = arith.addf %10, %12 : vector<8x256xf32>
    %14 = vector.extract_strided_slice %13 {offsets = [0, 0], sizes = [8, 192], strides = [1, 1]} : vector<8x256xf32> to vector<8x192xf32>
    %15 = arith.negf %14 : vector<8x192xf32>
    %16 = math.exp %15 : vector<8x192xf32>
    %cst_9 = arith.constant 1.000000e+00 : f32
    %17 = vector.broadcast %cst_9 : f32 to vector<8x192xf32>
    %18 = arith.addf %17, %16 : vector<8x192xf32>
    %19 = arith.divf %17, %18 : vector<8x192xf32>
    %20 = vector.extract_strided_slice %13 {offsets = [0, 192], sizes = [8, 64], strides = [1, 1]} : vector<8x256xf32> to vector<8x64xf32>
    %21 = math.tanh %20 : vector<8x64xf32>
    %22 = vector.extract_strided_slice %19 {offsets = [0, 0], sizes = [8, 64], strides = [1, 1]} : vector<8x192xf32> to vector<8x64xf32>
    %23 = vector.extract_strided_slice %19 {offsets = [0, 64], sizes = [8, 64], strides = [1, 1]} : vector<8x192xf32> to vector<8x64xf32>
    %24 = vector.extract_strided_slice %19 {offsets = [0, 128], sizes = [8, 64], strides = [1, 1]} : vector<8x192xf32> to vector<8x64xf32>
    %25 = arith.mulf %23, %7 : vector<8x64xf32>
    %26 = arith.mulf %22, %21 : vector<8x64xf32>
    %27 = arith.addf %25, %26 : vector<8x64xf32>
    %28 = math.tanh %27 : vector<8x64xf32>
    %29 = arith.mulf %24, %28 : vector<8x64xf32>
    %c0_10 = arith.constant 0 : index
    %c64 = arith.constant 64 : index
    %30 = vector.load %arg1[%c0_10, %c64] : memref<8x128xf32, #tpu.memory_space<vmem>>, vector<8x64xf32>
    %c0_11 = arith.constant 0 : index
    %c64_12 = arith.constant 64 : index
    %31 = vector.load %arg2[%c0_11, %c64_12] : memref<8x128xf32, #tpu.memory_space<vmem>>, vector<8x64xf32>
    %32 = tpu.concatenate %29, %30 in 1 : vector<8x64xf32>, vector<8x64xf32> -> vector<8x128xf32>
    %c0_13 = arith.constant 0 : index
    %c0_14 = arith.constant 0 : index
    %33 = vector.load %arg5[%c0_13, %c0_14] : memref<128x256xf32, #tpu.memory_space<vmem>>, vector<128x256xf32>
    %cst_15 = arith.constant dense<0.000000e+00> : vector<8x256xf32>
    %34 = tpu.matmul %32, %33, %cst_15 {dimension_numbers = #tpu.dot_dimension_numbers<[1], [0], [0], [1], [0, 0, 1, 1], [], []>} : vector<8x128xf32>, vector<128x256xf32>, vector<8x256xf32> -> vector<8x256xf32>
    %c0_16 = arith.constant 0 : index
    %c0_17 = arith.constant 0 : index
    %35 = vector.load %arg6[%c0_16, %c0_17] : memref<1x256xf32, #tpu.memory_space<vmem>>, vector<1x256xf32>
    %36 = vector.broadcast %35 : vector<1x256xf32> to vector<8x256xf32>
    %37 = arith.addf %34, %36 : vector<8x256xf32>
    %38 = vector.extract_strided_slice %37 {offsets = [0, 0], sizes = [8, 192], strides = [1, 1]} : vector<8x256xf32> to vector<8x192xf32>
    %39 = arith.negf %38 : vector<8x192xf32>
    %40 = math.exp %39 : vector<8x192xf32>
    %cst_18 = arith.constant 1.000000e+00 : f32
    %41 = vector.broadcast %cst_18 : f32 to vector<8x192xf32>
    %42 = arith.addf %41, %40 : vector<8x192xf32>
    %43 = arith.divf %41, %42 : vector<8x192xf32>
    %44 = vector.extract_strided_slice %37 {offsets = [0, 192], sizes = [8, 64], strides = [1, 1]} : vector<8x256xf32> to vector<8x64xf32>
    %45 = math.tanh %44 : vector<8x64xf32>
    %46 = vector.extract_strided_slice %43 {offsets = [0, 0], sizes = [8, 64], strides = [1, 1]} : vector<8x192xf32> to vector<8x64xf32>
    %47 = vector.extract_strided_slice %43 {offsets = [0, 64], sizes = [8, 64], strides = [1, 1]} : vector<8x192xf32> to vector<8x64xf32>
    %48 = vector.extract_strided_slice %43 {offsets = [0, 128], sizes = [8, 64], strides = [1, 1]} : vector<8x192xf32> to vector<8x64xf32>
    %49 = arith.mulf %47, %31 : vector<8x64xf32>
    %50 = arith.mulf %46, %45 : vector<8x64xf32>
    %51 = arith.addf %49, %50 : vector<8x64xf32>
    %52 = math.tanh %51 : vector<8x64xf32>
    %53 = arith.mulf %48, %52 : vector<8x64xf32>
    %54 = tpu.concatenate %29, %53 in 1 : vector<8x64xf32>, vector<8x64xf32> -> vector<8x128xf32>
    %c0_19 = arith.constant 0 : index
    %c0_20 = arith.constant 0 : index
    %55 = vector.load %arg10[%c0_19, %c0_20] : memref<8x128xf32, #tpu.memory_space<vmem>>, vector<8x128xf32>
    tpu.vector_store %arg10[%c0_19, %c0_20], %54 {strides = array<i32>} : memref<8x128xf32, #tpu.memory_space<vmem>>, vector<8x128xf32>,
    %56 = tpu.concatenate %27, %51 in 1 : vector<8x64xf32>, vector<8x64xf32> -> vector<8x128xf32>
    %c0_21 = arith.constant 0 : index
    %c0_22 = arith.constant 0 : index
    %57 = vector.load %arg11[%c0_21, %c0_22] : memref<8x128xf32, #tpu.memory_space<vmem>>, vector<8x128xf32>
    tpu.vector_store %arg11[%c0_21, %c0_22], %56 {strides = array<i32>} : memref<8x128xf32, #tpu.memory_space<vmem>>, vector<8x128xf32>,
    %c0_23 = arith.constant 0 : index
    %c0_24 = arith.constant 0 : index
    %58 = vector.load %arg7[%c0_23, %c0_24] : memref<64x128xf32, #tpu.memory_space<vmem>>, vector<64x128xf32>
    %cst_25 = arith.constant dense<0.000000e+00> : vector<8x128xf32>
    %59 = tpu.matmul %53, %58, %cst_25 {dimension_numbers = #tpu.dot_dimension_numbers<[1], [0], [0], [1], [0, 0, 1, 1], [], []>} : vector<8x64xf32>, vector<64x128xf32>, vector<8x128xf32> -> vector<8x128xf32>
    %c0_26 = arith.constant 0 : index
    %c0_27 = arith.constant 0 : index
    %60 = vector.load %arg8[%c0_26, %c0_27] : memref<1x128xf32, #tpu.memory_space<vmem>>, vector<1x128xf32>
    %61 = vector.broadcast %60 : vector<1x128xf32> to vector<8x128xf32>
    %62 = arith.addf %59, %61 : vector<8x128xf32>
    %c0_28 = arith.constant 0 : index
    %c0_29 = arith.constant 0 : index
    %63 = vector.load %arg9[%c0_28, %c0_29] : memref<8x128xf32, #tpu.memory_space<vmem>>, vector<8x128xf32>
    tpu.vector_store %arg9[%c0_28, %c0_29], %62 {strides = array<i32>} : memref<8x128xf32, #tpu.memory_space<vmem>>, vector<8x128xf32>,
    return
  }
}

</mosaic_0001>

<llo_original>
// kernel: tpu_custom_call.1
$region0: #{tpu_custom_call.1}
  #allocation0 [shape = 'u32[]', space=smem, size = 0x4, offset = 0x4, fixed_abs, tag = 'smem constant byte address 0x4 - core index']
  #allocation1 [shape = 'u32[144,128]{1,0:T(1,128)}', space=vmem, size = 0x12000, scoped, tag = 'internal scratch']
  %s0 = inlined_call_operand.vmem [shape: s32[8,1], index: 0, kind: input, shape index: {}]
  %s1 = inlined_call_operand.vmem [shape: f32[8,128], index: 1, kind: input, shape index: {}]
  %s2 = inlined_call_operand.vmem [shape: f32[8,128], index: 2, kind: input, shape index: {}]
  %s3 = inlined_call_operand.hbm [shape: f32[128,256], index: 3, kind: input, shape index: {}]
  %s4 = inlined_call_operand.vmem [shape: f32[1,256], index: 4, kind: input, shape index: {}]
  %s5 = inlined_call_operand.hbm [shape: f32[128,256], index: 5, kind: input, shape index: {}]
  %s6 = inlined_call_operand.vmem [shape: f32[1,256], index: 6, kind: input, shape index: {}]
  %s7 = inlined_call_operand.hbm [shape: f32[64,128], index: 7, kind: input, shape index: {}]
  %s8 = inlined_call_operand.vmem [shape: f32[1,128], index: 8, kind: input, shape index: {}]
  %s9 = inlined_call_operand.hbm [shape: f32[8,128], index: 9, kind: output, shape index: {0}]
  %s10 = inlined_call_operand.hbm [shape: f32[8,128], index: 10, kind: output, shape index: {1}]
  %s11 = inlined_call_operand.hbm [shape: f32[8,128], index: 11, kind: output, shape index: {2}]
  %12 = xla_tuple %s9, %s10, %s11
  %s13 = sld [smem:[#allocation0]]
  $region74: #{tpu_custom_call.1} parent=0
    _
  %s15 = ssub.s32 1, %s13
  %s16 = scalar_select 0, %s15, %s13
  $region1: #{tpu_custom_call.1} parent=0
    #allocation2 [shape = 'u8[131072]{0}', space=vmem, size = 0x20000, scoped, tag = 'input window, operand 3, single buffered']
    #allocation3 [shape = 's32[1]{0}', space=sflag, size = 0x4, scoped, tag = 'scoped memory for tpu_custom_call.1']
    #allocation4 [shape = 's32[1]{0}', space=sflag, size = 0x4, scoped, tag = 'scoped memory for tpu_custom_call.1']
    #allocation5 [shape = 'u8[131072]{0}', space=vmem, size = 0x20000, scoped, tag = 'input window, operand 5, single buffered']
    #allocation6 [shape = 's32[1]{0}', space=sflag, size = 0x4, scoped, tag = 'scoped memory for tpu_custom_call.1']
    #allocation7 [shape = 'u8[32768]{0}', space=vmem, size = 0x8000, scoped, tag = 'input window, operand 7, single buffered']
    #allocation8 [shape = 'u8[4096]{0}', space=vmem, size = 0x1000, scoped, tag = 'output window, operand 0, single buffered']
    #allocation9 [shape = 'u8[4096]{0}', space=vmem, size = 0x1000, scoped, tag = 'output window, operand 1, single buffered']
    #allocation10 [shape = 's32[1]{0}', space=sflag, size = 0x4, scoped, tag = 'scoped memory for tpu_custom_call.1']
    #allocation11 [shape = 'u8[4096]{0}', space=vmem, size = 0x1000, scoped, tag = 'output window, operand 2, single buffered']
    %17 = vsyncpa [#allocation3], 0
    %18 = vsyncpa [#allocation6], 0
    %19 = vsyncpa [#allocation4], 0
    %20 = vsyncpa [#allocation10], 0
    // Predicated region
    $region2: #{tpu_custom_call.1} parent=1 // pred_check
      _
    $region3: #{tpu_custom_call.1} parent=1 // pred_check_branch
      %22 = sbr.rel (0) target = $region5
    $region4: #{tpu_custom_call.1} parent=1 // pred_region
      _
    $region5: #{tpu_custom_call.1} parent=1 // pred_fallthru
      _
    // Predicated region
    $region6: #{tpu_custom_call.1} parent=1 // pred_check
      _
    $region7: #{tpu_custom_call.1} parent=1 // pred_check_branch
      %24 = sbr.rel (0) target = $region9
    $region8: #{tpu_custom_call.1} parent=1 // pred_region
      _
    $region9: #{tpu_custom_call.1} parent=1 // pred_fallthru
      _
    // Predicated region
    $region10: #{tpu_custom_call.1} parent=1 // pred_check
      _
    $region11: #{tpu_custom_call.1} parent=1 // pred_check_branch
      %26 = sbr.rel (0) target = $region13
    $region12: #{tpu_custom_call.1} parent=1 // pred_region
      _
    $region13: #{tpu_custom_call.1} parent=1 // pred_fallthru
      _
    // Predicated region
    $region14: #{tpu_custom_call.1} parent=1 // pred_check
      _
    $region15: #{tpu_custom_call.1} parent=1 // pred_check_branch
      %28 = sbr.rel (0) target = $region17
    $region16: #{tpu_custom_call.1} parent=1 // pred_region
      %s30 = ssub.s32 4096, 4096
      %31 = vsyncadd [#allocation3], %s30
      %s32 = sshll.u32 [#allocation2], 4
      %s33 = int_to_ptr.vmem [resolvable:$true] %s32
      %38 = dma.hbm_to_vmem [thread:$0]  %s3, 4096, %s33, [#allocation3], 256, 256, 16
    $region17: #{tpu_custom_call.1} parent=1 // pred_fallthru
      _
    // Predicated region
    $region18: #{tpu_custom_call.1} parent=1 // pred_check
      _
    $region19: #{tpu_custom_call.1} parent=1 // pred_check_branch
      %40 = sbr.rel (0) target = $region21
    $region20: #{tpu_custom_call.1} parent=1 // pred_region
      _
    $region21: #{tpu_custom_call.1} parent=1 // pred_fallthru
      _
    // Predicated region
    $region22: #{tpu_custom_call.1} parent=1 // pred_check
      _
    $region23: #{tpu_custom_call.1} parent=1 // pred_check_branch
      %42 = sbr.rel (0) target = $region25
    $region24: #{tpu_custom_call.1} parent=1 // pred_region
      %s44 = ssub.s32 4096, 4096
      %45 = vsyncadd [#allocation6], %s44
      %s46 = sshll.u32 [#allocation5], 4
      %s47 = int_to_ptr.vmem [resolvable:$true] %s46
      %52 = dma.hbm_to_vmem [thread:$0]  %s5, 4096, %s47, [#allocation6], 256, 256, 16
    $region25: #{tpu_custom_call.1} parent=1 // pred_fallthru
      _
    // Predicated region
    $region26: #{tpu_custom_call.1} parent=1 // pred_check
      _
    $region27: #{tpu_custom_call.1} parent=1 // pred_check_branch
      %54 = sbr.rel (0) target = $region29
    $region28: #{tpu_custom_call.1} parent=1 // pred_region
      _
    $region29: #{tpu_custom_call.1} parent=1 // pred_fallthru
      _
    // Predicated region
    $region30: #{tpu_custom_call.1} parent=1 // pred_check
      _
    $region31: #{tpu_custom_call.1} parent=1 // pred_check_branch
      %56 = sbr.rel (0) target = $region33
    $region32: #{tpu_custom_call.1} parent=1 // pred_region
      %s58 = ssub.s32 1024, 1024
      %59 = vsyncadd [#allocation6], %s58
      %s60 = sshll.u32 [#allocation7], 4
      %s61 = int_to_ptr.vmem [resolvable:$true] %s60
      %66 = dma.hbm_to_vmem [thread:$0]  %s7, 1024, %s61, [#allocation6], 128, 128, 8
    $region33: #{tpu_custom_call.1} parent=1 // pred_fallthru
      _
    // Predicated region
    $region34: #{tpu_custom_call.1} parent=1 // pred_check
      _
    $region35: #{tpu_custom_call.1} parent=1 // pred_check_branch
      %68 = sbr.rel (0) target = $region37
    $region36: #{tpu_custom_call.1} parent=1 // pred_region
      _
    $region37: #{tpu_custom_call.1} parent=1 // pred_fallthru
      _
    // Predicated region
    $region38: #{tpu_custom_call.1} parent=1 // pred_check
      _
    $region39: #{tpu_custom_call.1} parent=1 // pred_check_branch
      %70 = sbr.rel (0) target = $region41
    $region40: #{tpu_custom_call.1} parent=1 // pred_region
      %71 = dma.done [#allocation3], 4096
    $region41: #{tpu_custom_call.1} parent=1 // pred_fallthru
      _
    // Predicated region
    $region42: #{tpu_custom_call.1} parent=1 // pred_check
      _
    $region43: #{tpu_custom_call.1} parent=1 // pred_check_branch
      %73 = sbr.rel (0) target = $region45
    $region44: #{tpu_custom_call.1} parent=1 // pred_region
      %74 = dma.done [#allocation6], 4096
    $region45: #{tpu_custom_call.1} parent=1 // pred_fallthru
      _
    // Predicated region
    $region46: #{tpu_custom_call.1} parent=1 // pred_check
      _
    $region47: #{tpu_custom_call.1} parent=1 // pred_check_branch
      %76 = sbr.rel (0) target = $region49
    $region48: #{tpu_custom_call.1} parent=1 // pred_region
      %77 = dma.done [#allocation6], 1024
    $region49: #{tpu_custom_call.1} parent=1 // pred_fallthru
      _
    %v78 = vld [vmem:[%s0] sm:$0xff]
    %v79 = vlaneseq
    %v80 = vand.u32 %v79, 127
    %81 = vset.pattern.permute.xlu0 0
    %82 = vperm.xlu0 %81, %v78
    %v83 = vpop.permute.xlu0 %82
    %vm84 = vcmp.eq.s32.totalorder %v80, %v83
    %v85 = vsel %vm84, 1, 0
    %v86 = vcvt.s32.f32 %v85
    %v87 = vld [vmem:[%s1] sm:$0xff]
    %v88 = vld [vmem:[%s2] sm:$0xff]
    %90 = vrot.lane.b32.xlu0 %v87, 64
    %v91 = vpop.permute.xlu0 %90
    %vm93 = vcmask 523264
    %v94 = vsel %vm93, %v86, %v91
    %v95 = vld [vmem:[#allocation2] sm:$0xff]
    %v96 = vld [vmem:[#allocation2 + $0x8] sm:$0xff]
    %v97 = vld [vmem:[#allocation2 + $0x10] sm:$0xff]
    %v98 = vld [vmem:[#allocation2 + $0x18] sm:$0xff]
    %v99 = vld [vmem:[#allocation2 + $0x20] sm:$0xff]
    %v100 = vld [vmem:[#allocation2 + $0x28] sm:$0xff]
    %v101 = vld [vmem:[#allocation2 + $0x30] sm:$0xff]
    %v102 = vld [vmem:[#allocation2 + $0x38] sm:$0xff]
    %v103 = vld [vmem:[#allocation2 + $0x40] sm:$0xff]
    %v104 = vld [vmem:[#allocation2 + $0x48] sm:$0xff]
    %v105 = vld [vmem:[#allocation2 + $0x50] sm:$0xff]
    %v106 = vld [vmem:[#allocation2 + $0x58] sm:$0xff]
    %v107 = vld [vmem:[#allocation2 + $0x60] sm:$0xff]
    %v108 = vld [vmem:[#allocation2 + $0x68] sm:$0xff]
    %v109 = vld [vmem:[#allocation2 + $0x70] sm:$0xff]
    %v110 = vld [vmem:[#allocation2 + $0x78] sm:$0xff]
    %v111 = vld [vmem:[#allocation2 + $0x80] sm:$0xff]
    %v112 = vld [vmem:[#allocation2 + $0x88] sm:$0xff]
    %v113 = vld [vmem:[#allocation2 + $0x90] sm:$0xff]
    %v114 = vld [vmem:[#allocation2 + $0x98] sm:$0xff]
    %v115 = vld [vmem:[#allocation2 + $0xa0] sm:$0xff]
    %v116 = vld [vmem:[#allocation2 + $0xa8] sm:$0xff]
    %v117 = vld [vmem:[#allocation2 + $0xb0] sm:$0xff]
    %v118 = vld [vmem:[#allocation2 + $0xb8] sm:$0xff]
    %v119 = vld [vmem:[#allocation2 + $0xc0] sm:$0xff]
    %v120 = vld [vmem:[#allocation2 + $0xc8] sm:$0xff]
    %v121 = vld [vmem:[#allocation2 + $0xd0] sm:$0xff]
    %v122 = vld [vmem:[#allocation2 + $0xd8] sm:$0xff]
    %v123 = vld [vmem:[#allocation2 + $0xe0] sm:$0xff]
    %v124 = vld [vmem:[#allocation2 + $0xe8] sm:$0xff]
    %v125 = vld [vmem:[#allocation2 + $0xf0] sm:$0xff]
    %v126 = vld [vmem:[#allocation2 + $0xf8] sm:$0xff]
    %v127 = vld [vmem:[%s4] sm:$0x3]
    %v129 = vlaneseq
    %v130 = vshrl.u32 %v129, 7
    %v131 = vsub.s32 0, %v130
    %v132 = vrot.slane %v127, %v131
    %v133 = vlaneseq
    %v134 = vshrl.u32 %v133, 7
    %v135 = vsub.s32 1, %v134
    %v136 = vrot.slane %v127, %v135
    %139 = vmatprep.subr.mxu0 %v96
    %140 = vmatpush1.msra.mxu0 %v95
    %141 = vmatprep.subr.mxu0 %v98
    %142 = vmatpush1.msra.mxu0 %v97
    %143 = vmatprep.subr.mxu0 %v100
    %144 = vmatpush1.msra.mxu0 %v99
    %145 = vmatprep.subr.mxu0 %v102
    %146 = vmatpush1.msra.mxu0 %v101
    %147 = vmatprep.subr.mxu0 %v104
    %148 = vmatpush1.msra.mxu0 %v103
    %149 = vmatprep.subr.mxu0 %v106
    %150 = vmatpush1.msra.mxu0 %v105
    %151 = vmatprep.subr.mxu0 %v108
    %152 = vmatpush1.msra.mxu0 %v107
    %153 = vmatprep.subr.mxu0 %v110
    %154 = vmatpush1.msra.mxu0 %v109
    %155 = vmatprep.subr.mxu0 %v112
    %156 = vmatpush1.msra.mxu0 %v111
    %157 = vmatprep.subr.mxu0 %v114
    %158 = vmatpush1.msra.mxu0 %v113
    %159 = vmatprep.subr.mxu0 %v116
    %160 = vmatpush1.msra.mxu0 %v115
    %161 = vmatprep.subr.mxu0 %v118
    %162 = vmatpush1.msra.mxu0 %v117
    %163 = vmatprep.subr.mxu0 %v120
    %164 = vmatpush1.msra.mxu0 %v119
    %165 = vmatprep.subr.mxu0 %v122
    %166 = vmatpush1.msra.mxu0 %v121
    %167 = vmatprep.subr.mxu0 %v124
    %168 = vmatpush1.msra.mxu0 %v123
    %169 = vmatprep.subr.mxu0 %v126
    %170 = vmatpush1.msra.mxu0 %v125
    %171 = vmatprep.subr.mxu0 0.0
    %172 = vmatpush1.msra.mxu0 0.0
    %173 = vmatprep.subr.mxu0 0.0
    %174 = vmatpush1.msra.mxu0 0.0
    %175 = vmatprep.subr.mxu0 0.0
    %176 = vmatpush1.msra.mxu0 0.0
    %177 = vmatprep.subr.mxu0 0.0
    %178 = vmatpush1.msra.mxu0 0.0
    %179 = vmatprep.subr.mxu0 0.0
    %180 = vmatpush1.msra.mxu0 0.0
    %181 = vmatprep.subr.mxu0 0.0
    %182 = vmatpush1.msra.mxu0 0.0
    %183 = vmatprep.subr.mxu0 0.0
    %184 = vmatpush1.msra.mxu0 0.0
    %185 = vmatprep.subr.mxu0 0.0
    %186 = vmatpush1.msra.mxu0 0.0
    %187 = vmatprep.subr.mxu0 0.0
    %188 = vmatpush1.msra.mxu0 0.0
    %189 = vmatprep.subr.mxu0 0.0
    %190 = vmatpush1.msra.mxu0 0.0
    %191 = vmatprep.subr.mxu0 0.0
    %192 = vmatpush1.msra.mxu0 0.0
    %193 = vmatprep.subr.mxu0 0.0
    %194 = vmatpush1.msra.mxu0 0.0
    %195 = vmatprep.subr.mxu0 0.0
    %196 = vmatpush1.msra.mxu0 0.0
    %197 = vmatprep.subr.mxu0 0.0
    %198 = vmatpush1.msra.mxu0 0.0
    %199 = vmatprep.subr.mxu0 0.0
    %200 = vmatpush1.msra.mxu0 0.0
    %201 = vmatprep.subr.mxu0 0.0
    %202 = vmatpush1.msra.mxu0 0.0
    %203 = vmatprep.mubr.f32.mxu0 0.0
    %204 = vmatmul.mubr.f32.gmra.mrb[0].mxu0 %v94
    %v205 = vpop.f32.mrb[0].mxu0
    %v206 = vadd.f32 %v132, %v205
    %v207 = vpop.f32.mrb[0].mxu0
    %v208 = vadd.f32 %v136, %v207
    %209 = vdwg.mxu0
    %v210 = vxor.u32 %v206, 2147483648
    %v211 = vxor.u32 %v208, 2147483648
    %v212 = vmul.f32 %v210, 1.442695
    %v213 = vpow.pop %v212
    %v214 = vmul.f32 %v211, 1.442695
    %v215 = vpow.pop %v214
    %v216 = vadd.f32 %v213, 1.0
    %v217 = vadd.f32 %v215, 1.0
    %v218 = vrcp.pop %v216
    %v219 = vmul.f32 1.0, %v218
    %v220 = vrcp.pop %v217
    %v221 = vmul.f32 1.0, %v220
    %v222 = vtanh.pop %v208
    %224 = vrot.lane.b32.xlu0 %v88, 64
    %v225 = vpop.permute.xlu0 %224
    %v227 = vmul.f32 %v219, %v225
    %229 = vrot.lane.b32.xlu0 %v222, 64
    %v230 = vpop.permute.xlu0 %229
    %v232 = vmul.f32 %v219, %v230
    %234 = vrot.lane.b32.xlu0 %v232, 64
    %v235 = vpop.permute.xlu0 %234
    %v237 = vadd.f32 %v227, %v235
    %v238 = vtanh.pop %v237
    %240 = vrot.lane.b32.xlu0 %v238, 64
    %v241 = vpop.permute.xlu0 %240
    %v243 = vmul.f32 %v221, %v241
    %v244 = vsel %vm93, %v243, %v87
    %v245 = vld [vmem:[#allocation5] sm:$0xff]
    %v246 = vld [vmem:[#allocation5 + $0x8] sm:$0xff]
    %v247 = vld [vmem:[#allocation5 + $0x10] sm:$0xff]
    %v248 = vld [vmem:[#allocation5 + $0x18] sm:$0xff]
    %v249 = vld [vmem:[#allocation5 + $0x20] sm:$0xff]
    %v250 = vld [vmem:[#allocation5 + $0x28] sm:$0xff]
    %v251 = vld [vmem:[#allocation5 + $0x30] sm:$0xff]
    %v252 = vld [vmem:[#allocation5 + $0x38] sm:$0xff]
    %v253 = vld [vmem:[#allocation5 + $0x40] sm:$0xff]
    %v254 = vld [vmem:[#allocation5 + $0x48] sm:$0xff]
    %v255 = vld [vmem:[#allocation5 + $0x50] sm:$0xff]
    %v256 = vld [vmem:[#allocation5 + $0x58] sm:$0xff]
    %v257 = vld [vmem:[#allocation5 + $0x60] sm:$0xff]
    %v258 = vld [vmem:[#allocation5 + $0x68] sm:$0xff]
    %v259 = vld [vmem:[#allocation5 + $0x70] sm:$0xff]
    %v260 = vld [vmem:[#allocation5 + $0x78] sm:$0xff]
    %v261 = vld [vmem:[#allocation5 + $0x80] sm:$0xff]
    %v262 = vld [vmem:[#allocation5 + $0x88] sm:$0xff]
    %v263 = vld [vmem:[#allocation5 + $0x90] sm:$0xff]
    %v264 = vld [vmem:[#allocation5 + $0x98] sm:$0xff]
    %v265 = vld [vmem:[#allocation5 + $0xa0] sm:$0xff]
    %v266 = vld [vmem:[#allocation5 + $0xa8] sm:$0xff]
    %v267 = vld [vmem:[#allocation5 + $0xb0] sm:$0xff]
    %v268 = vld [vmem:[#allocation5 + $0xb8] sm:$0xff]
    %v269 = vld [vmem:[#allocation5 + $0xc0] sm:$0xff]
    %v270 = vld [vmem:[#allocation5 + $0xc8] sm:$0xff]
    %v271 = vld [vmem:[#allocation5 + $0xd0] sm:$0xff]
    %v272 = vld [vmem:[#allocation5 + $0xd8] sm:$0xff]
    %v273 = vld [vmem:[#allocation5 + $0xe0] sm:$0xff]
    %v274 = vld [vmem:[#allocation5 + $0xe8] sm:$0xff]
    %v275 = vld [vmem:[#allocation5 + $0xf0] sm:$0xff]
    %v276 = vld [vmem:[#allocation5 + $0xf8] sm:$0xff]
    %v277 = vld [vmem:[%s6] sm:$0x3]
    %v279 = vlaneseq
    %v280 = vshrl.u32 %v279, 7
    %v281 = vsub.s32 0, %v280
    %v282 = vrot.slane %v277, %v281
    %v283 = vlaneseq
    %v284 = vshrl.u32 %v283, 7
    %v285 = vsub.s32 1, %v284
    %v286 = vrot.slane %v277, %v285
    %289 = vmatprep.subr.mxu0 %v246
    %290 = vmatpush1.msra.mxu0 %v245
    %291 = vmatprep.subr.mxu0 %v248
    %292 = vmatpush1.msra.mxu0 %v247
    %293 = vmatprep.subr.mxu0 %v250
    %294 = vmatpush1.msra.mxu0 %v249
    %295 = vmatprep.subr.mxu0 %v252
    %296 = vmatpush1.msra.mxu0 %v251
    %297 = vmatprep.subr.mxu0 %v254
    %298 = vmatpush1.msra.mxu0 %v253
    %299 = vmatprep.subr.mxu0 %v256
    %300 = vmatpush1.msra.mxu0 %v255
    %301 = vmatprep.subr.mxu0 %v258
    %302 = vmatpush1.msra.mxu0 %v257
    %303 = vmatprep.subr.mxu0 %v260
    %304 = vmatpush1.msra.mxu0 %v259
    %305 = vmatprep.subr.mxu0 %v262
    %306 = vmatpush1.msra.mxu0 %v261
    %307 = vmatprep.subr.mxu0 %v264
    %308 = vmatpush1.msra.mxu0 %v263
    %309 = vmatprep.subr.mxu0 %v266
    %310 = vmatpush1.msra.mxu0 %v265
    %311 = vmatprep.subr.mxu0 %v268
    %312 = vmatpush1.msra.mxu0 %v267
    %313 = vmatprep.subr.mxu0 %v270
    %314 = vmatpush1.msra.mxu0 %v269
    %315 = vmatprep.subr.mxu0 %v272
    %316 = vmatpush1.msra.mxu0 %v271
    %317 = vmatprep.subr.mxu0 %v274
    %318 = vmatpush1.msra.mxu0 %v273
    %319 = vmatprep.subr.mxu0 %v276
    %320 = vmatpush1.msra.mxu0 %v275
    %321 = vmatprep.subr.mxu0 0.0
    %322 = vmatpush1.msra.mxu0 0.0
    %323 = vmatprep.subr.mxu0 0.0
    %324 = vmatpush1.msra.mxu0 0.0
    %325 = vmatprep.subr.mxu0 0.0
    %326 = vmatpush1.msra.mxu0 0.0
    %327 = vmatprep.subr.mxu0 0.0
    %328 = vmatpush1.msra.mxu0 0.0
    %329 = vmatprep.subr.mxu0 0.0
    %330 = vmatpush1.msra.mxu0 0.0
    %331 = vmatprep.subr.mxu0 0.0
    %332 = vmatpush1.msra.mxu0 0.0
    %333 = vmatprep.subr.mxu0 0.0
    %334 = vmatpush1.msra.mxu0 0.0
    %335 = vmatprep.subr.mxu0 0.0
    %336 = vmatpush1.msra.mxu0 0.0
    %337 = vmatprep.subr.mxu0 0.0
    %338 = vmatpush1.msra.mxu0 0.0
    %339 = vmatprep.subr.mxu0 0.0
    %340 = vmatpush1.msra.mxu0 0.0
    %341 = vmatprep.subr.mxu0 0.0
    %342 = vmatpush1.msra.mxu0 0.0
    %343 = vmatprep.subr.mxu0 0.0
    %344 = vmatpush1.msra.mxu0 0.0
    %345 = vmatprep.subr.mxu0 0.0
    %346 = vmatpush1.msra.mxu0 0.0
    %347 = vmatprep.subr.mxu0 0.0
    %348 = vmatpush1.msra.mxu0 0.0
    %349 = vmatprep.subr.mxu0 0.0
    %350 = vmatpush1.msra.mxu0 0.0
    %351 = vmatprep.subr.mxu0 0.0
    %352 = vmatpush1.msra.mxu0 0.0
    %353 = vmatprep.mubr.f32.mxu0 0.0
    %354 = vmatmul.mubr.f32.gmra.mrb[0].mxu0 %v244
    %v355 = vpop.f32.mrb[0].mxu0
    %v356 = vadd.f32 %v282, %v355
    %v357 = vpop.f32.mrb[0].mxu0
    %v358 = vadd.f32 %v286, %v357
    %359 = vdwg.mxu0
    %v360 = vxor.u32 %v356, 2147483648
    %v361 = vxor.u32 %v358, 2147483648
    %v362 = vmul.f32 %v360, 1.442695
    %v363 = vpow.pop %v362
    %v364 = vmul.f32 %v361, 1.442695
    %v365 = vpow.pop %v364
    %v366 = vadd.f32 %v363, 1.0
    %v367 = vadd.f32 %v365, 1.0
    %v368 = vrcp.pop %v366
    %v369 = vmul.f32 1.0, %v368
    %v370 = vrcp.pop %v367
    %v371 = vmul.f32 1.0, %v370
    %v372 = vtanh.pop %v358
    %v373 = vmul.f32 %v369, %v88
    %375 = vrot.lane.b32.xlu0 %v372, 64
    %v376 = vpop.permute.xlu0 %375
    %v378 = vmul.f32 %v369, %v376
    %380 = vrot.lane.b32.xlu0 %v378, 64
    %v381 = vpop.permute.xlu0 %380
    %v383 = vadd.f32 %v373, %v381
    %v384 = vtanh.pop %v383
    %386 = vrot.lane.b32.xlu0 %v384, 64
    %v387 = vpop.permute.xlu0 %386
    %v389 = vmul.f32 %v371, %v387
    %391 = vrot.lane.b32.xlu0 %v389, 64
    %v392 = vpop.permute.xlu0 %391
    %v394 = vsel %vm93, %v243, %v392
    %395 = vst [vmem:[#allocation9] sm:$0xff] %v394
    %397 = vrot.lane.b32.xlu0 %v237, 64
    %v398 = vpop.permute.xlu0 %397
    %v400 = vsel %vm93, %v398, %v383
    %401 = vst [vmem:[#allocation11] sm:$0xff] %v400
    %v402 = vld [vmem:[#allocation7] sm:$0xff]
    %v403 = vld [vmem:[#allocation7 + $0x8] sm:$0xff]
    %v404 = vld [vmem:[#allocation7 + $0x10] sm:$0xff]
    %v405 = vld [vmem:[#allocation7 + $0x18] sm:$0xff]
    %v406 = vld [vmem:[#allocation7 + $0x20] sm:$0xff]
    %v407 = vld [vmem:[#allocation7 + $0x28] sm:$0xff]
    %v408 = vld [vmem:[#allocation7 + $0x30] sm:$0xff]
    %v409 = vld [vmem:[#allocation7 + $0x38] sm:$0xff]
    %v410 = vld [vmem:[%s8] sm:$0x1]
    %v412 = vlaneseq
    %v413 = vshrl.u32 %v412, 7
    %v414 = vsub.s32 0, %v413
    %v415 = vrot.slane %v410, %v414
    %v417 = vsel %vm93, %v389, 0
    %419 = vmatprep.subr.mxu0 0.0
    %420 = vmatpush1.msra.mxu0 %v402
    %421 = vmatprep.subr.mxu0 0.0
    %422 = vmatpush1.msra.mxu0 %v403
    %423 = vmatprep.subr.mxu0 0.0
    %424 = vmatpush1.msra.mxu0 %v404
    %425 = vmatprep.subr.mxu0 0.0
    %426 = vmatpush1.msra.mxu0 %v405
    %427 = vmatprep.subr.mxu0 0.0
    %428 = vmatpush1.msra.mxu0 %v406
    %429 = vmatprep.subr.mxu0 0.0
    %430 = vmatpush1.msra.mxu0 %v407
    %431 = vmatprep.subr.mxu0 0.0
    %432 = vmatpush1.msra.mxu0 %v408
    %433 = vmatprep.subr.mxu0 0.0
    %434 = vmatpush1.msra.mxu0 %v409
    %435 = vmatprep.subr.mxu0 0.0
    %436 = vmatpush1.msra.mxu0 0.0
    %437 = vmatprep.subr.mxu0 0.0
    %438 = vmatpush1.msra.mxu0 0.0
    %439 = vmatprep.subr.mxu0 0.0
    %440 = vmatpush1.msra.mxu0 0.0
    %441 = vmatprep.subr.mxu0 0.0
    %442 = vmatpush1.msra.mxu0 0.0
    %443 = vmatprep.subr.mxu0 0.0
    %444 = vmatpush1.msra.mxu0 0.0
    %445 = vmatprep.subr.mxu0 0.0
    %446 = vmatpush1.msra.mxu0 0.0
    %447 = vmatprep.subr.mxu0 0.0
    %448 = vmatpush1.msra.mxu0 0.0
    %449 = vmatprep.subr.mxu0 0.0
    %450 = vmatpush1.msra.mxu0 0.0
    %451 = vmatprep.subr.mxu0 0.0
    %452 = vmatpush1.msra.mxu0 0.0
    %453 = vmatprep.subr.mxu0 0.0
    %454 = vmatpush1.msra.mxu0 0.0
    %455 = vmatprep.subr.mxu0 0.0
    %456 = vmatpush1.msra.mxu0 0.0
    %457 = vmatprep.subr.mxu0 0.0
    %458 = vmatpush1.msra.mxu0 0.0
    %459 = vmatprep.subr.mxu0 0.0
    %460 = vmatpush1.msra.mxu0 0.0
    %461 = vmatprep.subr.mxu0 0.0
    %462 = vmatpush1.msra.mxu0 0.0
    %463 = vmatprep.subr.mxu0 0.0
    %464 = vmatpush1.msra.mxu0 0.0
    %465 = vmatprep.subr.mxu0 0.0
    %466 = vmatpush1.msra.mxu0 0.0
    %467 = vmatprep.subr.mxu0 0.0
    %468 = vmatpush1.msra.mxu0 0.0
    %469 = vmatprep.subr.mxu0 0.0
    %470 = vmatpush1.msra.mxu0 0.0
    %471 = vmatprep.subr.mxu0 0.0
    %472 = vmatpush1.msra.mxu0 0.0
    %473 = vmatprep.subr.mxu0 0.0
    %474 = vmatpush1.msra.mxu0 0.0
    %475 = vmatprep.subr.mxu0 0.0
    %476 = vmatpush1.msra.mxu0 0.0
    %477 = vmatprep.subr.mxu0 0.0
    %478 = vmatpush1.msra.mxu0 0.0
    %479 = vmatprep.subr.mxu0 0.0
    %480 = vmatpush1.msra.mxu0 0.0
    %481 = vmatprep.subr.mxu0 0.0
    %482 = vmatpush1.msra.mxu0 0.0
    %483 = vmatprep.mubr.f32.mxu0 0.0
    %484 = vmatmul.mubr.f32.gmra.mrb[0].mxu0 %v417
    %v485 = vpop.f32.mrb[0].mxu0
    %v486 = vadd.f32 %v415, %v485
    %v487 = vpop.f32.mrb[0].mxu0
    %488 = vdwg.mxu0
    %489 = vst [vmem:[#allocation8] sm:$0xff] %v486
    // Predicated region
    $region50: #{tpu_custom_call.1} parent=1 // pred_check
      _
    $region51: #{tpu_custom_call.1} parent=1 // pred_check_branch
      %491 = sbr.rel (0) target = $region53
    $region52: #{tpu_custom_call.1} parent=1 // pred_region
      %s493 = ssub.s32 128, 128
      %494 = vsyncadd [#allocation4], %s493
      %s496 = sshll.u32 [#allocation8], 4
      %s497 = int_to_ptr.vmem [resolvable:$true] %s496
      %499 = dma.vmem_to_hbm [thread:$0]  %s497, 128, %s9, [#allocation4]
    $region53: #{tpu_custom_call.1} parent=1 // pred_fallthru
      _
    // Predicated region
    $region54: #{tpu_custom_call.1} parent=1 // pred_check
      _
    $region55: #{tpu_custom_call.1} parent=1 // pred_check_branch
      %501 = sbr.rel (0) target = $region57
    $region56: #{tpu_custom_call.1} parent=1 // pred_region
      %s503 = ssub.s32 128, 128
      %504 = vsyncadd [#allocation10], %s503
      %s506 = sshll.u32 [#allocation9], 4
      %s507 = int_to_ptr.vmem [resolvable:$true] %s506
      %509 = dma.vmem_to_hbm [thread:$0]  %s507, 128, %s10, [#allocation10]
    $region57: #{tpu_custom_call.1} parent=1 // pred_fallthru
      _
    // Predicated region
    $region58: #{tpu_custom_call.1} parent=1 // pred_check
      _
    $region59: #{tpu_custom_call.1} parent=1 // pred_check_branch
      %511 = sbr.rel (0) target = $region61
    $region60: #{tpu_custom_call.1} parent=1 // pred_region
      %s513 = ssub.s32 128, 128
      %514 = vsyncadd [#allocation10], %s513
      %s516 = sshll.u32 [#allocation11], 4
      %s517 = int_to_ptr.vmem [resolvable:$true] %s516
      %519 = dma.vmem_to_hbm [thread:$0]  %s517, 128, %s11, [#allocation10]
    $region61: #{tpu_custom_call.1} parent=1 // pred_fallthru
      _
    // Predicated region
    $region62: #{tpu_custom_call.1} parent=1 // pred_check
      _
    $region63: #{tpu_custom_call.1} parent=1 // pred_check_branch
      %521 = sbr.rel (0) target = $region65
    $region64: #{tpu_custom_call.1} parent=1 // pred_region
      %522 = dma.done [#allocation4], 128
    $region65: #{tpu_custom_call.1} parent=1 // pred_fallthru
      _
    // Predicated region
    $region66: #{tpu_custom_call.1} parent=1 // pred_check
      _
    $region67: #{tpu_custom_call.1} parent=1 // pred_check_branch
      %524 = sbr.rel (0) target = $region69
    $region68: #{tpu_custom_call.1} parent=1 // pred_region
      %525 = dma.done [#allocation10], 128
    $region69: #{tpu_custom_call.1} parent=1 // pred_fallthru
      _
    // Predicated region
    $region70: #{tpu_custom_call.1} parent=1 // pred_check
      _
    $region71: #{tpu_custom_call.1} parent=1 // pred_check_branch
      %527 = sbr.rel (0) target = $region73
    $region72: #{tpu_custom_call.1} parent=1 // pred_region
      %528 = dma.done [#allocation10], 128
    $region73: #{tpu_custom_call.1} parent=1 // pred_fallthru
      _
    %529 = vsyncpa [#allocation3], 1
    %530 = vsyncpa [#allocation6], 1
    %531 = vsyncpa [#allocation4], 1
    %532 = vsyncpa [#allocation10], 1

</llo_original>
